<compile_context>
chip_gen: v7x
topology: tpu7x:2x2x1
jax: 0.10.0
libtpu: 0.0.40
codegen_flags: <defaults>
</compile_context>

<pallas_src>
import functools

import jax
import jax.numpy as jnp
from jax import lax
from jax.experimental import pallas as pl
from jax.experimental.pallas import tpu as pltpu


def _nll_surv_kernel(*refs, alpha, eps, b_total, tb, k_bins, fused_s):
    if fused_s:
        haz_ref, yc_ref, out_ref = refs
        s_ref = None
    else:
        haz_ref, s_ref, yc_ref, out_ref = refs

    haz = haz_ref[...].astype(jnp.float32)                   # (K, TB) lane-dense
    yc = yc_ref[...]                                         # (2, TB) int32
    y = yc[0:1, :]                                           # (1, TB) int32
    c = pltpu.bitcast(yc[1:2, :], jnp.float32)               # (1, TB) f32

    # Dense gather-as-select: row index over the sublane (time-bin) axis.
    row = lax.broadcasted_iota(jnp.int32, (k_bins, tb), 0)   # (K, TB)
    m_y = row == y                                           # (K, TB)

    # hazards[y]
    haz_at_y = jnp.sum(jnp.where(m_y, haz, 0.0), axis=0, keepdims=True)

    if fused_s:
        # S = cumprod(1 - hazards) fused in-kernel; rows consumed immediately
        # (only acc / the two gather targets stay live).
        spad_at_y = jnp.where(y == 0, 1.0, 0.0)              # S_padded[y], y==0 case
        spad_at_y1 = jnp.zeros((1, tb), jnp.float32)         # S_padded[y+1] = S[y]
        acc = jnp.ones((1, tb), jnp.float32)
        for k in range(k_bins):
            acc = acc * (1.0 - haz[k:k + 1, :])              # acc == S[k]
            spad_at_y1 = jnp.where(y == k, acc, spad_at_y1)
            spad_at_y = jnp.where(y == (k + 1), acc, spad_at_y)
    else:
        s = s_ref[...].astype(jnp.float32)                   # (K, TB)
        spad_at_y1 = jnp.sum(jnp.where(m_y, s, 0.0), axis=0, keepdims=True)
        m_ym1 = row == (y - 1)
        s_prev = jnp.sum(jnp.where(m_ym1, s, 0.0), axis=0, keepdims=True)
        spad_at_y = jnp.where(y == 0, 1.0, s_prev)           # 1 if y==0 else S[y-1]

    # Per-factor eps clamp (as in the reference), then a single fused log.
    log_uncens = jnp.log(jnp.maximum(spad_at_y, eps) * jnp.maximum(haz_at_y, eps))
    log_cens = jnp.log(jnp.maximum(spad_at_y1, eps))

    uncensored = -(1.0 - c) * log_uncens
    censored = -c * log_cens
    neg_l = censored + uncensored
    loss = (1.0 - alpha) * neg_l + alpha * uncensored        # (1, TB)

    # Mask lanes beyond the true batch size (zero-padded tail of last tile).
    col = pl.program_id(0) * tb + lax.broadcasted_iota(jnp.int32, (1, tb), 1)
    loss = jnp.where(col < b_total, loss, 0.0)

    partial = jnp.sum(loss, axis=1, keepdims=True)           # (1, 1) tile partial
    # Lane-dense partial-sum output (lane 0 carries the value).
    out_ref[...] = jnp.broadcast_to(partial, out_ref.shape).astype(out_ref.dtype)


def nll_surv_loss_pallas(hazards, S, Y, c, alpha=0.15, eps=1e-7, max_tb=None):
    """Pallas implementation of nll_loss (NLLSurvLoss forward)."""
    B, K = hazards.shape
    LANE = 128

    def _prep(x):
        # bf16 stays bf16 in HBM (upcast in-kernel); everything else -> f32.
        if x.dtype not in (jnp.bfloat16, jnp.float32):
            x = x.astype(jnp.float32)
        return x

    hazards = _prep(hazards)
    fused_s = S is None
    if not fused_s:
        S = _prep(S)

    haz_bytes = hazards.dtype.itemsize
    s_bytes = 0 if fused_s else S.dtype.itemsize
    bytes_per_lane = K * (haz_bytes + s_bytes) + 2 * 4       # + packed (Y, c)

    # ~4 MiB of input per grid step (double-buffered -> ~8 MiB) keeps the loop
    # bandwidth-bound instead of per-step-overhead-bound, while staying well
    # under the scoped-VMEM limit we request below (v5e-safe).
    STEP_BUDGET = 4 * 1024 * 1024
    b_ceil = ((B + LANE - 1) // LANE) * LANE
    tb = (STEP_BUDGET // bytes_per_lane) // LANE * LANE
    tb = max(LANE, min(tb, 65536, b_ceil))
    if max_tb is not None:
        tb = max(LANE, min(tb, (max_tb // LANE) * LANE))
    num_tiles = (B + tb - 1) // tb
    b_pad = num_tiles * tb

    def _to_lanes(x2d):
        pad = b_pad - x2d.shape[1]
        if pad:
            x2d = jnp.pad(x2d, ((0, 0), (0, pad)))
        return x2d

    # Lane-dense (K, B) layout: batch on the 128-lane axis (pad fuses with the
    # transpose copy, so this is a single wrapper-side HBM pass per tensor).
    haz_t = _to_lanes(jnp.transpose(hazards, (1, 0)))                  # (K, Bp)

    # Pack Y (int32) and c (f32 bit-cast to int32) into one (2, Bp) input.
    y_row = Y.reshape(1, B).astype(jnp.int32)
    c_row = lax.bitcast_convert_type(c.reshape(1, B).astype(jnp.float32),
                                     jnp.int32)
    yc = _to_lanes(jnp.concatenate([y_row, c_row], axis=0))            # (2, Bp)

    inputs = [haz_t]
    in_specs = [pl.BlockSpec((K, tb), lambda i: (0, i))]
    if not fused_s:
        s_t = _to_lanes(jnp.transpose(S, (1, 0)))                      # (K, Bp)
        inputs.append(s_t)
        in_specs.append(pl.BlockSpec((K, tb), lambda i: (0, i)))
    inputs.append(yc)
    in_specs.append(pl.BlockSpec((2, tb), lambda i: (0, i)))

    kernel = functools.partial(
        _nll_surv_kernel, alpha=float(alpha), eps=float(eps),
        b_total=B, tb=tb, k_bins=K, fused_s=fused_s)

    in_bytes = sum(int(x.size) * x.dtype.itemsize for x in inputs)
    cost = pl.CostEstimate(
        flops=10 * K * B,
        transcendentals=2 * B,
        bytes_accessed=in_bytes + num_tiles * LANE * 4)

    out = pl.pallas_call(
        kernel,
        out_shape=jax.ShapeDtypeStruct((1, num_tiles * LANE), jnp.float32),
        grid=(num_tiles,),
        in_specs=in_specs,
        out_specs=pl.BlockSpec((1, LANE), lambda i: (0, i)),
        compiler_params=pltpu.CompilerParams(
            dimension_semantics=("parallel",),        # shards tiles on v7x's 2 TCs
            vmem_limit_bytes=40 * 1024 * 1024),
        cost_estimate=cost,
    )(*inputs)

    partials = out.reshape(num_tiles, LANE)[:, 0]     # one partial per tile
    return jnp.sum(partials) / B


class NLLSurvLossPallas:
    """Mirror of the PyTorch NLLSurvLoss module."""

    def __init__(self, alpha=0.15):
        self.alpha = alpha

    def __call__(self, hazards, surv, label, c):
        return nll_surv_loss_pallas(hazards, surv, label, c, alpha=self.alpha)


def _nll_surv_loss_ref(hazards, S, Y, c, alpha=0.15, eps=1e-7):
    """Pure-JAX reference (mirrors the torch code)."""
    B = Y.shape[0]
    Y = Y.reshape(B, 1)
    c = c.reshape(B, 1).astype(jnp.float32)
    hazards = hazards.astype(jnp.float32)
    if S is None:
        S = jnp.cumprod(1.0 - hazards, axis=1)
    S = S.astype(jnp.float32)
    S_padded = jnp.concatenate([jnp.ones_like(c), S], axis=1)
    gather = lambda x, idx: jnp.take_along_axis(x, idx, axis=1)
    uncensored = -(1.0 - c) * (
        jnp.log(jnp.clip(gather(S_padded, Y), min=eps))
        + jnp.log(jnp.clip(gather(hazards, Y), min=eps)))
    censored = -c * jnp.log(jnp.clip(gather(S_padded, Y + 1), min=eps))
    neg_l = censored + uncensored
    loss = (1.0 - alpha) * neg_l + alpha * uncensored
    return jnp.mean(loss)


if __name__ == "__main__":
    key = jax.random.PRNGKey(0)
    B, K = 8, 4  # batch of 8 samples, 4 discrete time bins

    k1, k2, k3 = jax.random.split(key, 3)
    logits = jax.random.normal(k1, (B, K), dtype=jnp.float32)
    hazards = jax.nn.sigmoid(logits)                                  # (B, K)
    surv = jnp.cumprod(1.0 - hazards, axis=1)                         # (B, K)
    label = jax.random.randint(k2, (B,), 0, K, dtype=jnp.int32)       # (B,)
    cens = (jax.random.uniform(k3, (B,)) > 0.5).astype(jnp.float32)   # (B,)

    loss_fn = NLLSurvLossPallas(alpha=0.15)

    # Path 1: S provided.
    loss = jax.block_until_ready(loss_fn(hazards, surv, label, cens))
    ref = _nll_surv_loss_ref(hazards, surv, label, cens, alpha=0.15)
    assert jnp.allclose(loss, ref, rtol=1e-5, atol=1e-5), (loss, ref)

    # Path 2: S is None (cumprod fused in-kernel).
    loss_ns = jax.block_until_ready(loss_fn(hazards, None, label, cens))
    ref_ns = _nll_surv_loss_ref(hazards, None, label, cens, alpha=0.15)
    assert jnp.allclose(loss_ns, ref_ns, rtol=1e-5, atol=1e-5), (loss_ns, ref_ns)

    # Path 3: multi-tile grid + ragged batch tail (forced small tile).
    B2 = 300
    k4, k5, k6 = jax.random.split(jax.random.PRNGKey(1), 3)
    haz2 = jax.nn.sigmoid(jax.random.normal(k4, (B2, K), dtype=jnp.float32))
    surv2 = jnp.cumprod(1.0 - haz2, axis=1)
    lab2 = jax.random.randint(k5, (B2,), 0, K, dtype=jnp.int32)
    c2 = (jax.random.uniform(k6, (B2,)) > 0.5).astype(jnp.float32)
    loss2 = jax.block_until_ready(
        nll_surv_loss_pallas(haz2, surv2, lab2, c2, alpha=0.15, max_tb=128))
    ref2 = _nll_surv_loss_ref(haz2, surv2, lab2, c2, alpha=0.15)
    assert jnp.allclose(loss2, ref2, rtol=1e-5, atol=1e-5), (loss2, ref2)

    print("KERNEL_OK")
</pallas_src>

<mosaic_0001>
module attributes {stable_mosaic.version = 11 : i64} {
  func.func @_nll_surv_kernel(%arg0: i32, %arg1: memref<4x128xf32, #tpu.memory_space<vmem>>, %arg2: memref<4x128xf32, #tpu.memory_space<vmem>>, %arg3: memref<2x128xi32, #tpu.memory_space<vmem>>, %arg4: memref<1x128xf32, #tpu.memory_space<vmem>>) attributes {dimension_semantics = [#tpu.dimension_semantics<parallel>], iteration_bounds = array<i64: 1>, scalar_prefetch = 0 : i64, scratch_operands = 0 : i64, tpu.core_type = #tpu.core_type<tc>, window_params = [{transform_indices = @transform_0, window_bounds = array<i64: 4, 128>}, {transform_indices = @transform_1, window_bounds = array<i64: 4, 128>}, {transform_indices = @transform_2, window_bounds = array<i64: 2, 128>}, {transform_indices = @transform_3, window_bounds = array<i64: 1, 128>}]} {
    %c0 = arith.constant 0 : index
    %c0_0 = arith.constant 0 : index
    %0 = vector.load %arg1[%c0, %c0_0] : memref<4x128xf32, #tpu.memory_space<vmem>>, vector<4x128xf32>
    %c0_1 = arith.constant 0 : index
    %c0_2 = arith.constant 0 : index
    %1 = vector.load %arg3[%c0_1, %c0_2] : memref<2x128xi32, #tpu.memory_space<vmem>>, vector<2x128xi32>
    %2 = vector.extract_strided_slice %1 {offsets = [0, 0], sizes = [1, 128], strides = [1, 1]} : vector<2x128xi32> to vector<1x128xi32>
    %3 = vector.extract_strided_slice %1 {offsets = [1, 0], sizes = [1, 128], strides = [1, 1]} : vector<2x128xi32> to vector<1x128xi32>
    %4 = tpu.bitcast %3 : vector<1x128xi32> -> vector<1x128xf32>
    %5 = tpu.iota {dimensions = array<i32: 0>} : vector<4x128xi32>
    %6 = vector.broadcast %2 : vector<1x128xi32> to vector<4x128xi32>
    %7 = arith.cmpi eq, %5, %6 : vector<4x128xi32>
    %cst = arith.constant 0.000000e+00 : f32
    %8 = vector.broadcast %cst : f32 to vector<4x128xf32>
    %9 = arith.select %7, %0, %8 : vector<4x128xi1>, vector<4x128xf32>
    %cst_3 = arith.constant dense<0.000000e+00> : vector<128xf32>
    %10 = vector.multi_reduction <add>, %9, %cst_3 [0] : vector<4x128xf32> to vector<128xf32>
    %11 = vector.shape_cast %10 : vector<128xf32> to vector<1x128xf32>
    %c0_4 = arith.constant 0 : index
    %c0_5 = arith.constant 0 : index
    %12 = vector.load %arg2[%c0_4, %c0_5] : memref<4x128xf32, #tpu.memory_space<vmem>>, vector<4x128xf32>
    %cst_6 = arith.constant 0.000000e+00 : f32
    %13 = vector.broadcast %cst_6 : f32 to vector<4x128xf32>
    %14 = arith.select %7, %12, %13 : vector<4x128xi1>, vector<4x128xf32>
    %cst_7 = arith.constant dense<0.000000e+00> : vector<128xf32>
    %15 = vector.multi_reduction <add>, %14, %cst_7 [0] : vector<4x128xf32> to vector<128xf32>
    %16 = vector.shape_cast %15 : vector<128xf32> to vector<1x128xf32>
    %c1_i32 = arith.constant 1 : i32
    %17 = vector.broadcast %c1_i32 : i32 to vector<1x128xi32>
    %18 = arith.subi %2, %17 : vector<1x128xi32>
    %19 = vector.broadcast %18 : vector<1x128xi32> to vector<4x128xi32>
    %20 = arith.cmpi eq, %5, %19 : vector<4x128xi32>
    %cst_8 = arith.constant 0.000000e+00 : f32
    %21 = vector.broadcast %cst_8 : f32 to vector<4x128xf32>
    %22 = arith.select %20, %12, %21 : vector<4x128xi1>, vector<4x128xf32>
    %cst_9 = arith.constant dense<0.000000e+00> : vector<128xf32>
    %23 = vector.multi_reduction <add>, %22, %cst_9 [0] : vector<4x128xf32> to vector<128xf32>
    %24 = vector.shape_cast %23 : vector<128xf32> to vector<1x128xf32>
    %c0_i32 = arith.constant 0 : i32
    %25 = vector.broadcast %c0_i32 : i32 to vector<1x128xi32>
    %26 = arith.cmpi eq, %2, %25 : vector<1x128xi32>
    %cst_10 = arith.constant 1.000000e+00 : f32
    %27 = vector.broadcast %cst_10 : f32 to vector<1x128xf32>
    %28 = arith.select %26, %27, %24 : vector<1x128xi1>, vector<1x128xf32>
    %cst_11 = arith.constant 1.000000e-07 : f32
    %29 = vector.broadcast %cst_11 : f32 to vector<1x128xf32>
    %30 = arith.maximumf %28, %29 : vector<1x128xf32>
    %cst_12 = arith.constant 1.000000e-07 : f32
    %31 = vector.broadcast %cst_12 : f32 to vector<1x128xf32>
    %32 = arith.maximumf %11, %31 : vector<1x128xf32>
    %33 = arith.mulf %30, %32 : vector<1x128xf32>
    %34 = math.log %33 : vector<1x128xf32>
    %cst_13 = arith.constant 1.000000e-07 : f32
    %35 = vector.broadcast %cst_13 : f32 to vector<1x128xf32>
    %36 = arith.maximumf %16, %35 : vector<1x128xf32>
    %37 = math.log %36 : vector<1x128xf32>
    %cst_14 = arith.constant 1.000000e+00 : f32
    %38 = vector.broadcast %cst_14 : f32 to vector<1x128xf32>
    %39 = arith.subf %38, %4 : vector<1x128xf32>
    %cst_15 = arith.constant 0.000000e+00 : f32
    %40 = vector.broadcast %cst_15 : f32 to vector<1x128xf32>
    %41 = arith.subf %40, %39 : vector<1x128xf32>
    %42 = arith.mulf %41, %34 : vector<1x128xf32>
    %cst_16 = arith.constant 0.000000e+00 : f32
    %43 = vector.broadcast %cst_16 : f32 to vector<1x128xf32>
    %44 = arith.subf %43, %4 : vector<1x128xf32>
    %45 = arith.mulf %44, %37 : vector<1x128xf32>
    %46 = arith.addf %45, %42 : vector<1x128xf32>
    %cst_17 = arith.constant 8.500000e-01 : f32
    %47 = vector.broadcast %cst_17 : f32 to vector<1x128xf32>
    %48 = arith.mulf %47, %46 : vector<1x128xf32>
    %cst_18 = arith.constant 1.500000e-01 : f32
    %49 = vector.broadcast %cst_18 : f32 to vector<1x128xf32>
    %50 = arith.mulf %49, %42 : vector<1x128xf32>
    %51 = arith.addf %48, %50 : vector<1x128xf32>
    %c128_i32 = arith.constant 128 : i32
    %52 = arith.muli %arg0, %c128_i32 : i32
    %53 = tpu.iota {dimensions = array<i32: 1>} : vector<1x128xi32>
    %54 = vector.broadcast %52 : i32 to vector<1x128xi32>
    %55 = arith.addi %54, %53 : vector<1x128xi32>
    %c8_i32 = arith.constant 8 : i32
    %56 = vector.broadcast %c8_i32 : i32 to vector<1x128xi32>
    %57 = arith.cmpi slt, %55, %56 : vector<1x128xi32>
    %cst_19 = arith.constant 0.000000e+00 : f32
    %58 = vector.broadcast %cst_19 : f32 to vector<1x128xf32>
    %59 = arith.select %57, %51, %58 : vector<1x128xi1>, vector<1x128xf32>
    %cst_20 = arith.constant dense<0.000000e+00> : vector<1xf32>
    %60 = vector.multi_reduction <add>, %59, %cst_20 [1] : vector<1x128xf32> to vector<1xf32>
    %61 = vector.shape_cast %60 : vector<1xf32> to vector<1x1xf32>
    %62 = vector.shape_cast %61 : vector<1x1xf32> to vector<1x1xf32>
    %63 = vector.broadcast %62 : vector<1x1xf32> to vector<1x128xf32>
    %c0_21 = arith.constant 0 : index
    %c0_22 = arith.constant 0 : index
    %64 = vector.load %arg4[%c0_21, %c0_22] : memref<1x128xf32, #tpu.memory_space<vmem>>, vector<1x128xf32>
    tpu.vector_store %arg4[%c0_21, %c0_22], %63 {strides = array<i32>} : memref<1x128xf32, #tpu.memory_space<vmem>>, vector<1x128xf32>,
    return
  }
  func.func @transform_0(%arg0: i32) -> (i32, i32) {
    %c0_i32 = arith.constant 0 : i32
    %c0_i32_0 = arith.constant 0 : i32
    return %c0_i32, %arg0 : i32, i32
  }
  func.func @transform_1(%arg0: i32) -> (i32, i32) {
    %c0_i32 = arith.constant 0 : i32
    %c0_i32_0 = arith.constant 0 : i32
    return %c0_i32, %arg0 : i32, i32
  }
  func.func @transform_2(%arg0: i32) -> (i32, i32) {
    %c0_i32 = arith.constant 0 : i32
    %c0_i32_0 = arith.constant 0 : i32
    return %c0_i32, %arg0 : i32, i32
  }
  func.func @transform_3(%arg0: i32) -> (i32, i32) {
    %c0_i32 = arith.constant 0 : i32
    %c0_i32_0 = arith.constant 0 : i32
    return %c0_i32, %arg0 : i32, i32
  }
}

</mosaic_0001>

<llo_original>
// kernel: tpu_custom_call.1
$region0: #{tpu_custom_call.1}
  #allocation0 [shape = 'u32[]', space=smem, size = 0x4, offset = 0x4, fixed_abs, tag = 'smem constant byte address 0x4 - core index']
  #allocation1 [shape = 'u32[144,128]{1,0:T(1,128)}', space=vmem, size = 0x12000, scoped, tag = 'internal scratch']
  %s0 = inlined_call_operand.hbm [shape: f32[4,128], index: 0, kind: input, shape index: {}]
  %s1 = inlined_call_operand.hbm [shape: f32[4,128], index: 1, kind: input, shape index: {}]
  %s2 = inlined_call_operand.vmem [shape: s32[2,128], index: 2, kind: input, shape index: {}]
  %s3 = inlined_call_operand.hbm [shape: f32[1,128], index: 3, kind: output, shape index: {}]
  %s4 = sld [smem:[#allocation0]]
  $region30: #{tpu_custom_call.1} parent=0
    _
  %s6 = ssub.s32 1, %s4
  %s7 = scalar_select 0, %s6, %s4
  $region1: #{tpu_custom_call.1} parent=0
    #allocation2 [shape = 'u8[2048]{0}', space=vmem, size = 0x800, scoped, tag = 'input window, operand 0, single buffered']
    #allocation3 [shape = 's32[1]{0}', space=sflag, size = 0x4, scoped, tag = 'scoped memory for tpu_custom_call.1']
    #allocation4 [shape = 's32[1]{0}', space=sflag, size = 0x4, scoped, tag = 'scoped memory for tpu_custom_call.1']
    #allocation5 [shape = 'u8[2048]{0}', space=vmem, size = 0x800, scoped, tag = 'input window, operand 1, single buffered']
    #allocation6 [shape = 's32[1]{0}', space=sflag, size = 0x4, scoped, tag = 'scoped memory for tpu_custom_call.1']
    #allocation7 [shape = 'u8[512]{0}', space=vmem, size = 0x400, scoped, tag = 'output window, operand 0, single buffered']
    %8 = vsyncpa [#allocation3], 0
    %9 = vsyncpa [#allocation6], 0
    %10 = vsyncpa [#allocation4], 0
    // Predicated region
    $region2: #{tpu_custom_call.1} parent=1 // pred_check
      _
    $region3: #{tpu_custom_call.1} parent=1 // pred_check_branch
      %12 = sbr.rel (0) target = $region5
    $region4: #{tpu_custom_call.1} parent=1 // pred_region
      %s14 = ssub.s32 64, 64
      %15 = vsyncadd [#allocation3], %s14
      %s17 = sshll.u32 [#allocation2], 4
      %s18 = int_to_ptr.vmem [resolvable:$true] %s17
      %20 = dma.hbm_to_vmem [thread:$0]  %s0, 64, %s18, [#allocation3]
    $region5: #{tpu_custom_call.1} parent=1 // pred_fallthru
      _
    // Predicated region
    $region6: #{tpu_custom_call.1} parent=1 // pred_check
      _
    $region7: #{tpu_custom_call.1} parent=1 // pred_check_branch
      %22 = sbr.rel (0) target = $region9
    $region8: #{tpu_custom_call.1} parent=1 // pred_region
      %s24 = ssub.s32 64, 64
      %25 = vsyncadd [#allocation6], %s24
      %s27 = sshll.u32 [#allocation5], 4
      %s28 = int_to_ptr.vmem [resolvable:$true] %s27
      %30 = dma.hbm_to_vmem [thread:$0]  %s1, 64, %s28, [#allocation6]
    $region9: #{tpu_custom_call.1} parent=1 // pred_fallthru
      _
    // Predicated region
    $region10: #{tpu_custom_call.1} parent=1 // pred_check
      _
    $region11: #{tpu_custom_call.1} parent=1 // pred_check_branch
      %32 = sbr.rel (0) target = $region13
    $region12: #{tpu_custom_call.1} parent=1 // pred_region
      _
    $region13: #{tpu_custom_call.1} parent=1 // pred_fallthru
      _
    // Predicated region
    $region14: #{tpu_custom_call.1} parent=1 // pred_check
      _
    $region15: #{tpu_custom_call.1} parent=1 // pred_check_branch
      %34 = sbr.rel (0) target = $region17
    $region16: #{tpu_custom_call.1} parent=1 // pred_region
      %35 = dma.done [#allocation3], 64
    $region17: #{tpu_custom_call.1} parent=1 // pred_fallthru
      _
    // Predicated region
    $region18: #{tpu_custom_call.1} parent=1 // pred_check
      _
    $region19: #{tpu_custom_call.1} parent=1 // pred_check_branch
      %37 = sbr.rel (0) target = $region21
    $region20: #{tpu_custom_call.1} parent=1 // pred_region
      %38 = dma.done [#allocation6], 64
    $region21: #{tpu_custom_call.1} parent=1 // pred_fallthru
      _
    %v39 = vld [vmem:[#allocation2] sm:$0xf]
    %v40 = vld [vmem:[%s2] sm:$0x3]
    %v42 = vlaneseq
    %v43 = vshrl.u32 %v42, 7
    %v44 = vlaneseq
    %v45 = vshrl.u32 %v44, 7
    %v46 = vsub.s32 0, %v45
    %v47 = vrot.slane %v40, %v46
    %vm48 = vcmp.eq.s32.totalorder %v43, %v47
    %v49 = vsel %vm48, %v39, 0.0
    %vm50 = vcmask 1043456
    %v51 = vsel %vm50, %v49, 0.0
    %v52 = vrot.slane %v51, 4
    %v53 = vadd.f32 %v51, %v52
    %v54 = vrot.slane %v53, 2
    %v55 = vadd.f32 %v53, %v54
    %v56 = vrot.slane %v55, 1
    %v57 = vadd.f32 %v55, %v56
    %v58 = vld [vmem:[#allocation5] sm:$0xf]
    %v59 = vsel %vm48, %v58, 0.0
    %v60 = vsel %vm50, %v59, 0.0
    %v61 = vrot.slane %v60, 4
    %v62 = vadd.f32 %v60, %v61
    %v63 = vrot.slane %v62, 2
    %v64 = vadd.f32 %v62, %v63
    %v65 = vrot.slane %v64, 1
    %v66 = vadd.f32 %v64, %v65
    %v67 = vsub.s32 %v40, 1
    %v68 = vlaneseq
    %v69 = vshrl.u32 %v68, 7
    %v70 = vsub.s32 0, %v69
    %v71 = vrot.slane %v67, %v70
    %vm72 = vcmp.eq.s32.totalorder %v43, %v71
    %v73 = vsel %vm72, %v58, 0.0
    %v74 = vsel %vm50, %v73, 0.0
    %v75 = vrot.slane %v74, 4
    %v76 = vadd.f32 %v74, %v75
    %v77 = vrot.slane %v76, 2
    %v78 = vadd.f32 %v76, %v77
    %v79 = vrot.slane %v78, 1
    %v80 = vadd.f32 %v78, %v79
    %vm81 = vcmp.eq.s32.totalorder %v40, 0
    %v82 = vsel %vm81, 1.0, %v80
    %v83 = vmax.f32 %v82, 1e-07
    %v84 = vmax.f32 %v57, 1e-07
    %v85 = vmul.f32 %v83, %v84
    %v86 = vlog2.pop %v85
    %v87 = vmul.f32 %v86, 0.6931472
    %v88 = vmax.f32 %v66, 1e-07
    %v89 = vlog2.pop %v88
    %v90 = vmul.f32 %v89, 0.6931472
    %v91 = vsub.f32 1.0, %v40
    %v92 = vsub.f32 0.0, %v91
    %v94 = vrot.slane %v87, 7
    %v96 = vmul.f32 %v92, %v94
    %v97 = vsub.f32 0.0, %v40
    %v98 = vmul.f32 %v97, %v90
    %v99 = vadd.f32 %v98, %v96
    %v100 = vmul.f32 %v99, 0.85
    %v101 = vmul.f32 %v96, 0.15
    %v102 = vadd.f32 %v100, %v101
    %s103 = smul.u32 0, 128
    %v104 = vlaneseq
    %v105 = vand.u32 %v104, 127
    %v106 = vstv %s103
    %v107 = vadd.s32 %v106, %v105
    %vm108 = vcmp.lt.s32.totalorder %v107, 8
    %v109 = vsel %vm108, %v102, 0.0
    %vm110 = vcmask 1041409
    %v111 = vsel %vm110, %v109, 0.0
    %112 = vadd.xlane.f32.xlu0 %v111
    %v113 = vpop.xlane.xlu0 %112
    %114 = vst [vmem:[#allocation7 - $0x1] sm:$0x2] %v113
    // Predicated region
    $region22: #{tpu_custom_call.1} parent=1 // pred_check
      _
    $region23: #{tpu_custom_call.1} parent=1 // pred_check_branch
      %116 = sbr.rel (0) target = $region25
    $region24: #{tpu_custom_call.1} parent=1 // pred_region
      %s118 = ssub.s32 16, 16
      %119 = vsyncadd [#allocation4], %s118
      %s121 = sshll.u32 [#allocation7], 4
      %s122 = int_to_ptr.vmem [resolvable:$true] %s121
      %124 = dma.vmem_to_hbm [thread:$0]  %s122, 16, %s3, [#allocation4]
    $region25: #{tpu_custom_call.1} parent=1 // pred_fallthru
      _
    // Predicated region
    $region26: #{tpu_custom_call.1} parent=1 // pred_check
      _
    $region27: #{tpu_custom_call.1} parent=1 // pred_check_branch
      %126 = sbr.rel (0) target = $region29
    $region28: #{tpu_custom_call.1} parent=1 // pred_region
      %127 = dma.done [#allocation4], 16
    $region29: #{tpu_custom_call.1} parent=1 // pred_fallthru
      _
    %128 = vsyncpa [#allocation3], 1
    %129 = vsyncpa [#allocation6], 1
    %130 = vsyncpa [#allocation4], 1

</llo_original>
